<compile_context>
chip_gen: v7x
topology: tpu7x:2x2x1
jax: 0.10.0
libtpu: 0.0.40
codegen_flags: <defaults>
</compile_context>

<pallas_src>
import jax
import jax.numpy as jnp
from jax.experimental import pallas as pl
from jax.experimental.pallas import tpu as pltpu


def _round_up(x, m):
    return ((x + m - 1) // m) * m


def _cdiv(a, b):
    return (a + b - 1) // b


def _vmem_capacity_bytes():
    """Per-generation VMEM size; conservative (v7x) fallback if unavailable."""
    try:
        return int(pltpu.get_tpu_info().vmem_capacity_bytes)
    except Exception:
        return 64 * 1024 * 1024


def _de_conv_kernel(w_ref, b_ref, p_ref, o_ref):
    # w_ref: (Cout_p8, K)      BN-scale-folded conv weight (resident block)
    # b_ref: (Cout_p8, 1)      folded BN+conv bias        (resident block)
    # p_ref: (1, K, TM)        im2col patch band, pixels on the lane axis
    # o_ref: (1, Cout_p8, TM)  output band: channels on sublane, lane-dense
    acc = jnp.dot(w_ref[...], p_ref[0], preferred_element_type=jnp.float32)
    y = acc + b_ref[...]
    o_ref[0] = jnp.maximum(y, 0.0).astype(o_ref.dtype)


@jax.jit
def de_conv_forward(x_nchw, conv_w, conv_b, bn_gamma, bn_beta, bn_mean, bn_var):
    """Forward of `de_conv` (conv3x3 -> BatchNorm2d(eval) -> ReLU).

    x_nchw : (N, Cin, H, W)   conv_w : (Cout, Cin, 3, 3)   conv_b : (Cout,)
    returns (N, Cout, H, W)
    """
    eps = 1e-5  # PyTorch BatchNorm2d default
    N, Cin, H, W = x_nchw.shape
    Cout = conv_w.shape[0]
    K = 9 * Cin
    HW = H * W

    # ---- layout plumbing (fused by XLA under this single jit) ----
    x = x_nchw.astype(jnp.float32)
    x_pad = jnp.pad(x, ((0, 0), (0, 0), (1, 1), (1, 1)))

    # im2col, NCHW-native: tap (kh, kw) major, ci minor along K.  Channel sits
    # before spatial in NCHW, so no transpose is needed to get (N, K, H*W).
    taps = [x_pad[:, :, kh:kh + H, kw:kw + W]
            for kh in range(3) for kw in range(3)]
    patches = jnp.concatenate(taps, axis=1).reshape(N, K, HW)

    # (Cout, Cin, 3, 3) -> (Cout, 3, 3, Cin) -> (Cout, 9*Cin); matches patch K order.
    w_t = jnp.transpose(conv_w, (0, 2, 3, 1)).astype(jnp.float32).reshape(Cout, K)

    # Fold eval-mode BatchNorm (running stats) + conv bias.  Scale goes into
    # the weight rows (weight is tiny & resident, so this is genuinely free).
    inv_std = 1.0 / jnp.sqrt(bn_var.astype(jnp.float32) + eps)
    scale = bn_gamma.astype(jnp.float32) * inv_std
    bias = bn_beta.astype(jnp.float32) + (conv_b.astype(jnp.float32)
                                          - bn_mean.astype(jnp.float32)) * scale
    w_scaled = w_t * scale[:, None]

    Cout_p = _round_up(Cout, 8)            # sublane dim of output (no 128 pad!)
    w_p = jnp.pad(w_scaled, ((0, Cout_p - Cout), (0, 0)))
    b_p = jnp.pad(bias, (0, Cout_p - Cout)).reshape(Cout_p, 1)

    # ---- per-generation pixel-tile selection (lane-dense, VMEM-budgeted) ----
    vmem_cap = _vmem_capacity_bytes()
    budget = vmem_cap // 3                              # streaming-tile budget
    fixed = 2 * (Cout_p * K + Cout_p) * 4               # resident weight + bias
    per_col = 2 * (K + Cout_p) * 4                      # dbuf patch + out column
    tm_budget = max(128, ((budget - fixed) // per_col) // 128 * 128)

    HW_128 = _round_up(HW, 128)
    tm = min(HW_128, 2048, tm_budget)
    grid_m = _cdiv(HW_128, tm)
    # Keep the total parallel step count even so both v7x TensorCores get work.
    if (N * grid_m) % 2 == 1 and tm > 128:
        grid_m += 1
        tm = _round_up(_cdiv(HW_128, grid_m), 128)
        grid_m = _cdiv(HW_128, tm)
    HWP = grid_m * tm

    patches_p = jnp.pad(patches, ((0, 0), (0, 0), (0, HWP - HW)))

    # vmem limit derived from actual tile sizes (not hardcoded); capped well
    # under each generation's physical VMEM (v7x 64 MiB -> 48, v6e 128 -> 96).
    need = (2 * (K * tm + Cout_p * tm) + 2 * (Cout_p * K + Cout_p)) * 4
    vmem_limit = int(min(max(2 * need, 16 * 1024 * 1024), (vmem_cap * 3) // 4))
    vmem_limit = max(vmem_limit, need + (2 << 20))

    out = pl.pallas_call(
        _de_conv_kernel,
        out_shape=jax.ShapeDtypeStruct((N, Cout_p, HWP), jnp.float32),
        grid_spec=pltpu.PrefetchScalarGridSpec(
            num_scalar_prefetch=0,
            grid=(N, grid_m),
            in_specs=[
                pl.BlockSpec((Cout_p, K), lambda n, m: (0, 0)),   # weight (resident)
                pl.BlockSpec((Cout_p, 1), lambda n, m: (0, 0)),   # bias   (resident)
                pl.BlockSpec((1, K, tm), lambda n, m: (n, 0, m)),  # patches (streamed)
            ],
            out_specs=pl.BlockSpec((1, Cout_p, tm), lambda n, m: (n, 0, m)),
        ),
        compiler_params=pltpu.CompilerParams(
            dimension_semantics=("parallel", "parallel"),
            vmem_limit_bytes=vmem_limit,
        ),
    )(w_p, b_p, patches_p)

    # Already channel-major: just drop padding and fold pixels back to (H, W).
    out = out[:, :Cout, :HW].reshape(N, Cout, H, W)
    return out


def _reference(x_nchw, conv_w, conv_b, bn_gamma, bn_beta, bn_mean, bn_var,
               eps=1e-5):
    """Plain-JAX reference (NCHW, same semantics) for a sanity check."""
    y = jax.lax.conv_general_dilated(
        x_nchw.astype(jnp.float32), conv_w.astype(jnp.float32),
        window_strides=(1, 1), padding=((1, 1), (1, 1)),
        dimension_numbers=("NCHW", "OIHW", "NCHW"))
    y = y + conv_b[None, :, None, None]
    inv_std = 1.0 / jnp.sqrt(bn_var + eps)
    y = (y - bn_mean[None, :, None, None]) * (bn_gamma * inv_std)[None, :, None, None] \
        + bn_beta[None, :, None, None]
    return jnp.maximum(y, 0.0)


if __name__ == "__main__":
    # Small shapes consistent with de_conv(in_ch=4, out_ch=8) on a 16x16 map.
    N, Cin, Cout, H, W = 2, 4, 8, 16, 16

    key = jax.random.PRNGKey(0)
    k_x, k_w, k_b, k_g, k_bt, k_m, k_v = jax.random.split(key, 7)

    x = jax.random.normal(k_x, (N, Cin, H, W), dtype=jnp.float32)
    conv_w = jax.random.normal(k_w, (Cout, Cin, 3, 3), dtype=jnp.float32) * 0.1
    conv_b = jax.random.normal(k_b, (Cout,), dtype=jnp.float32) * 0.1
    bn_gamma = 1.0 + 0.1 * jax.random.normal(k_g, (Cout,), dtype=jnp.float32)
    bn_beta = 0.1 * jax.random.normal(k_bt, (Cout,), dtype=jnp.float32)
    bn_mean = 0.1 * jax.random.normal(k_m, (Cout,), dtype=jnp.float32)
    bn_var = jnp.abs(jax.random.normal(k_v, (Cout,), dtype=jnp.float32)) + 0.5

    out = de_conv_forward(x, conv_w, conv_b, bn_gamma, bn_beta, bn_mean, bn_var)
    out = jax.block_until_ready(out)

    ref = _reference(x, conv_w, conv_b, bn_gamma, bn_beta, bn_mean, bn_var)
    assert out.shape == (N, Cout, H, W)
    assert jnp.max(jnp.abs(out - ref)) < 1e-4

    print("KERNEL_OK")
</pallas_src>

<mosaic_0001>
module attributes {stable_mosaic.version = 11 : i64} {
  func.func @_de_conv_kernel(%arg0: i32, %arg1: i32, %arg2: memref<8x36xf32, #tpu.memory_space<vmem>>, %arg3: memref<8x1xf32, #tpu.memory_space<vmem>>, %arg4: memref<1x36x256xf32, #tpu.memory_space<vmem>>, %arg5: memref<1x8x256xf32, #tpu.memory_space<vmem>>) attributes {dimension_semantics = [#tpu.dimension_semantics<parallel>, #tpu.dimension_semantics<parallel>], iteration_bounds = array<i64: 2, 1>, scalar_prefetch = 0 : i64, scratch_operands = 0 : i64, tpu.core_type = #tpu.core_type<tc>, window_params = [{pipeline_mode = #tpu.pipeline_mode<synchronous>, transform_indices = @transform_0, window_bounds = array<i64: 8, 36>}, {pipeline_mode = #tpu.pipeline_mode<synchronous>, transform_indices = @transform_1, window_bounds = array<i64: 8, 1>}, {transform_indices = @transform_2, window_bounds = array<i64: 1, 36, 256>}, {transform_indices = @transform_3, window_bounds = array<i64: 1, 8, 256>}]} {
    %c0 = arith.constant 0 : index
    %c0_0 = arith.constant 0 : index
    %0 = vector.load %arg2[%c0, %c0_0] : memref<8x36xf32, #tpu.memory_space<vmem>>, vector<8x36xf32>
    %c0_1 = arith.constant 0 : index
    %c0_2 = arith.constant 0 : index
    %c0_3 = arith.constant 0 : index
    %1 = vector.load %arg4[%c0_1, %c0_2, %c0_3] : memref<1x36x256xf32, #tpu.memory_space<vmem>>, vector<1x36x256xf32>
    %2 = vector.shape_cast %1 : vector<1x36x256xf32> to vector<36x256xf32>
    %cst = arith.constant dense<0.000000e+00> : vector<8x256xf32>
    %3 = tpu.matmul %0, %2, %cst {dimension_numbers = #tpu.dot_dimension_numbers<[1], [0], [0], [1], [0, 0, 1, 1], [], []>} : vector<8x36xf32>, vector<36x256xf32>, vector<8x256xf32> -> vector<8x256xf32>
    %c0_4 = arith.constant 0 : index
    %c0_5 = arith.constant 0 : index
    %4 = vector.load %arg3[%c0_4, %c0_5] : memref<8x1xf32, #tpu.memory_space<vmem>>, vector<8x1xf32>
    %5 = vector.broadcast %4 : vector<8x1xf32> to vector<8x256xf32>
    %6 = arith.addf %3, %5 : vector<8x256xf32>
    %cst_6 = arith.constant 0.000000e+00 : f32
    %7 = vector.broadcast %cst_6 : f32 to vector<8x256xf32>
    %8 = arith.maximumf %6, %7 : vector<8x256xf32>
    %c0_7 = arith.constant 0 : index
    %c0_8 = arith.constant 0 : index
    %c0_9 = arith.constant 0 : index
    %9 = vector.load %arg5[%c0_7, %c0_8, %c0_9] : memref<1x8x256xf32, #tpu.memory_space<vmem>>, vector<1x8x256xf32>
    %10 = vector.shape_cast %9 : vector<1x8x256xf32> to vector<8x256xf32>
    %11 = vector.shape_cast %8 : vector<8x256xf32> to vector<1x8x256xf32>
    tpu.vector_store %arg5[%c0_7, %c0_8, %c0_9], %11 {strides = array<i32>} : memref<1x8x256xf32, #tpu.memory_space<vmem>>, vector<1x8x256xf32>,
    return
  }
  func.func @transform_0(%arg0: i32, %arg1: i32) -> (i32, i32) {
    %c0_i32 = arith.constant 0 : i32
    %c0_i32_0 = arith.constant 0 : i32
    %c0_i32_1 = arith.constant 0 : i32
    return %c0_i32, %c0_i32_0 : i32, i32
  }
  func.func @transform_1(%arg0: i32, %arg1: i32) -> (i32, i32) {
    %c0_i32 = arith.constant 0 : i32
    %c0_i32_0 = arith.constant 0 : i32
    %c0_i32_1 = arith.constant 0 : i32
    return %c0_i32, %c0_i32_0 : i32, i32
  }
  func.func @transform_2(%arg0: i32, %arg1: i32) -> (i32, i32, i32) {
    %c0_i32 = arith.constant 0 : i32
    %c0_i32_0 = arith.constant 0 : i32
    return %arg0, %c0_i32, %arg1 : i32, i32, i32
  }
  func.func @transform_3(%arg0: i32, %arg1: i32) -> (i32, i32, i32) {
    %c0_i32 = arith.constant 0 : i32
    %c0_i32_0 = arith.constant 0 : i32
    return %arg0, %c0_i32, %arg1 : i32, i32, i32
  }
}

</mosaic_0001>

<llo_original>
// kernel: de_conv_forward.1
$region0: #{de_conv_forward.1}
  #allocation0 [shape = 'u32[]', space=smem, size = 0x4, offset = 0x4, fixed_abs, tag = 'smem constant byte address 0x4 - core index']
  #allocation1 [shape = 'u32[144,128]{1,0:T(1,128)}', space=vmem, size = 0x12000, scoped, tag = 'internal scratch']
  %s0 = inlined_call_operand.vmem [shape: f32[8,36], index: 0, kind: input, shape index: {}]
  %s1 = inlined_call_operand.vmem [shape: f32[8,1], index: 1, kind: input, shape index: {}]
  %s2 = inlined_call_operand.vmem [shape: f32[2,36,256], index: 2, kind: input, shape index: {}]
  %s3 = inlined_call_operand.vmem [shape: f32[2,8,256], index: 3, kind: output, shape index: {}]
  %s4 = sld [smem:[#allocation0]]
  $region45: #{de_conv_forward.1} parent=0
    _
  %s6 = ssub.s32 1, %s4
  %s7 = scalar_select 0, %s6, %s4
  loop: start=0, step=1, limit=4
  $region2: #{de_conv_forward.1} parent=0 // loop_pre_header
    _
  $region3: #{de_conv_forward.1} parent=0 // loop_header
    %s9 = sphi 0, %s13
    %p10 = scmp.ge.s32.totalorder %s9, 4
    %s16 = sphi 0, %s28
    %s17 = sphi 0, %s24
    %s18 = sphi 0, %s16
    %s19 = sphi 0, %s17
    %s20 = sphi 0, %s18
    %s21 = sphi 0, %s19
    %s29 = sphi 0, %s29
    %s31 = sphi 0, %s29
    %s32 = sphi 0, %s31
    %s46 = sphi 0, %s32
    %s50 = sphi 0, %s50
    %s52 = sphi 0, %s50
    %s53 = sphi 0, %s52
    %s67 = sphi 0, %s53
    %s75 = sphi 0, %s77
    %s78 = sphi 0, %s75
    %s79 = sphi 0, %s78
    %s95 = sphi 0, %s79
    %s103 = sphi 0, %s105
    %s106 = sphi 0, %s103
    %s107 = sphi 0, %s106
    %s123 = sphi 0, %s107
  $region4: #{de_conv_forward.1} parent=0 // loop_header_branch
    %12 = sbr.rel (%p10) target = $region8
  $region5: #{de_conv_forward.1} parent=0 // loop_body
    %s14 = ssub.s32 %s9, 1
    %s15 = ssub.s32 %s9, 2
    %s22 = sadd.s32 1, %s17
    %p23 = scmp.ge.s32.totalorder %s22, 1
    %s24 = scalar_select %p23, 0, %s22
    %s25 = sadd.s32 1, %s16
    %s26 = scalar_select %p23, %s25, %s16
    %p27 = scmp.ge.s32.totalorder %s26, 2
    %s28 = scalar_select %p27, 0, %s26
    %s30 = sadd.s32 %s29, 1
    %p33 = scmp.eq.s32.totalorder %s9, 1
    %p34 = scmp.ne.s32.totalorder %s29, %s31
    %p35 = scmp.eq.s32.totalorder %s9, 0
    %p36 = por %p34, %p35
    %p37 = scmp.ne.s32.totalorder %s29, %s31
    %p38 = scmp.eq.s32.totalorder %s14, 1
    %p39 = por %p37, %p38
    %p40 = scmp.ne.s32.totalorder %s31, %s32
    %p41 = scmp.eq.s32.totalorder %s14, 0
    %p42 = por %p40, %p41
    %p43 = scmp.ne.s32.totalorder %s31, %s32
    %p44 = scmp.eq.s32.totalorder %s15, 1
    %p45 = por %p43, %p44
    %p47 = scmp.ne.s32.totalorder %s32, %s46
    %p48 = scmp.eq.s32.totalorder %s15, 0
    %p49 = por %p47, %p48
    %s51 = sadd.s32 %s50, 1
    %p54 = scmp.eq.s32.totalorder %s9, 1
    %p55 = scmp.ne.s32.totalorder %s50, %s52
    %p56 = scmp.eq.s32.totalorder %s9, 0
    %p57 = por %p55, %p56
    %p58 = scmp.ne.s32.totalorder %s50, %s52
    %p59 = scmp.eq.s32.totalorder %s14, 1
    %p60 = por %p58, %p59
    %p61 = scmp.ne.s32.totalorder %s52, %s53
    %p62 = scmp.eq.s32.totalorder %s14, 0
    %p63 = por %p61, %p62
    %p64 = scmp.ne.s32.totalorder %s52, %s53
    %p65 = scmp.eq.s32.totalorder %s15, 1
    %p66 = por %p64, %p65
    %p68 = scmp.ne.s32.totalorder %s53, %s67
    %p69 = scmp.eq.s32.totalorder %s15, 0
    %p70 = por %p68, %p69
    %s71 = ssub.s32 %s16, %s28
    %s72 = ssub.s32 %s17, %s24
    %s73 = sor.u32 %s71, %s72
    %p74 = scmp.eq.s32.totalorder %s73, 0
    %s76 = sadd.s32 %s75, 1
    %s77 = scalar_select %p74, %s75, %s76
    %p80 = pneg %p74
    %p81 = scmp.eq.s32.totalorder %s9, 1
    %p82 = por %p80, %p81
    %p83 = scmp.ne.s32.totalorder %s75, %s78
    %p84 = scmp.eq.s32.totalorder %s9, 0
    %p85 = por %p83, %p84
    %p86 = scmp.ne.s32.totalorder %s75, %s78
    %p87 = scmp.eq.s32.totalorder %s14, 1
    %p88 = por %p86, %p87
    %p89 = scmp.ne.s32.totalorder %s78, %s79
    %p90 = scmp.eq.s32.totalorder %s14, 0
    %p91 = por %p89, %p90
    %p92 = scmp.ne.s32.totalorder %s78, %s79
    %p93 = scmp.eq.s32.totalorder %s15, 1
    %p94 = por %p92, %p93
    %p96 = scmp.ne.s32.totalorder %s79, %s95
    %p97 = scmp.eq.s32.totalorder %s15, 0
    %p98 = por %p96, %p97
    %s99 = ssub.s32 %s16, %s28
    %s100 = ssub.s32 %s17, %s24
    %s101 = sor.u32 %s99, %s100
    %p102 = scmp.eq.s32.totalorder %s101, 0
    %s104 = sadd.s32 %s103, 1
    %s105 = scalar_select %p102, %s103, %s104
    %p108 = pneg %p102
    %p109 = scmp.eq.s32.totalorder %s9, 1
    %p110 = por %p108, %p109
    %p111 = scmp.ne.s32.totalorder %s103, %s106
    %p112 = scmp.eq.s32.totalorder %s9, 0
    %p113 = por %p111, %p112
    %p114 = scmp.ne.s32.totalorder %s103, %s106
    %p115 = scmp.eq.s32.totalorder %s14, 1
    %p116 = por %p114, %p115
    %p117 = scmp.ne.s32.totalorder %s106, %s107
    %p118 = scmp.eq.s32.totalorder %s14, 0
    %p119 = por %p117, %p118
    %p120 = scmp.ne.s32.totalorder %s106, %s107
    %p121 = scmp.eq.s32.totalorder %s15, 1
    %p122 = por %p120, %p121
    %p124 = scmp.ne.s32.totalorder %s107, %s123
    %p125 = scmp.eq.s32.totalorder %s15, 0
    %p126 = por %p124, %p125
    %p127 = scmp.le.s32.totalorder 1, %s9
    %p128 = scmp.lt.s32.totalorder %s9, 3
    %p129 = pnand %p127, %p128
    %p130 = pneg %p129
    // Predicated region
    $region9: #{de_conv_forward.1} parent=5 // pred_check
      _
    $region10: #{de_conv_forward.1} parent=5 // pred_check_branch
      %132 = sbr.rel (%p129) target = $region12
    $region11: #{de_conv_forward.1} parent=5 // pred_region
      %s133 = ssub.s32 %s9, 1
      // Predicated region
      $region13: #{de_conv_forward.1} parent=11 // pred_check
        %p134 = pneg %p42
      $region14: #{de_conv_forward.1} parent=11 // pred_check_branch
        %136 = sbr.rel (%p134) target = $region16
      $region15: #{de_conv_forward.1} parent=11 // pred_region
        _
      $region16: #{de_conv_forward.1} parent=11 // pred_fallthru
        _
      // Predicated region
      $region17: #{de_conv_forward.1} parent=11 // pred_check
        %p137 = pneg %p63
      $region18: #{de_conv_forward.1} parent=11 // pred_check_branch
        %139 = sbr.rel (%p137) target = $region20
      $region19: #{de_conv_forward.1} parent=11 // pred_region
        _
      $region20: #{de_conv_forward.1} parent=11 // pred_fallthru
        _
    $region12: #{de_conv_forward.1} parent=5 // pred_fallthru
      _
    %p140 = scmp.lt.s32.totalorder %s9, 2
    // Predicated region
    $region21: #{de_conv_forward.1} parent=5 // pred_check
      %p141 = pneg %p140
    $region22: #{de_conv_forward.1} parent=5 // pred_check_branch
      %143 = sbr.rel (%p141) target = $region24
    $region23: #{de_conv_forward.1} parent=5 // pred_region
      // Predicated region
      $region25: #{de_conv_forward.1} parent=23 // pred_check
        %p144 = pneg %p85
      $region26: #{de_conv_forward.1} parent=23 // pred_check_branch
        %146 = sbr.rel (%p144) target = $region28
      $region27: #{de_conv_forward.1} parent=23 // pred_region
        %s147 = smul.u32 2, %s17
        %p148 = scmp.lt.s32.totalorder %s16, 1
        %s149 = scalar_select %p148, %s16, 1
        %p150 = scmp.lt.s32.totalorder %s147, 1
        %s151 = scalar_select %p150, %s147, 1
        %s152 = smul.addr %s149, 10
        %s153 = sadd.s32 %s151, %s152
        %s154 = smul.addr %s153, 8
        %s155 = scalar_lea.vmem %s2, %s154
        %s156 = smul.u32 2, %s17
      $region28: #{de_conv_forward.1} parent=23 // pred_fallthru
        _
    $region24: #{de_conv_forward.1} parent=5 // pred_fallthru
      _
    %p157 = scmp.le.s32.totalorder 1, %s9
    %p158 = scmp.lt.s32.totalorder %s9, 3
    %p159 = pnand %p157, %p158
    %p160 = pneg %p159
    // Predicated region
    $region29: #{de_conv_forward.1} parent=5 // pred_check
      _
    $region30: #{de_conv_forward.1} parent=5 // pred_check_branch
      %162 = sbr.rel (%p159) target = $region32
    $region31: #{de_conv_forward.1} parent=5 // pred_region
      %s163 = ssub.s32 %s9, 1
      %p164 = pneg %p42
      %p165 = pneg %p39
      %p166 = pneg %p63
      %p167 = pneg %p60
      %s168 = smul.u32 2, %s19
      %p169 = scmp.lt.s32.totalorder %s18, 1
      %s170 = scalar_select %p169, %s18, 1
      %p171 = scmp.lt.s32.totalorder %s168, 1
      %s172 = scalar_select %p171, %s168, 1
      %s173 = smul.addr %s170, 10
      %s174 = sadd.s32 %s172, %s173
      %s175 = smul.addr %s174, 8
      %s176 = scalar_lea.vmem %s2, %s175
      %p177 = pneg %p91
      %p178 = pneg %p88
      %p179 = pneg %p119
      %p180 = pneg %p116
      %s181 = smul.u32 2, %s19
      %p182 = scmp.lt.s32.totalorder %s18, 1
      %s183 = scalar_select %p182, %s18, 1
      %p184 = scmp.lt.s32.totalorder %s181, 1
      %s185 = scalar_select %p184, %s181, 1
      %s186 = smul.addr %s183, 2
      %s187 = sadd.s32 %s185, %s186
      %s188 = smul.addr %s187, 8
      %s189 = scalar_lea.vmem %s3, %s188
      %s190 = smul.u32 2, %s19
      %p191 = scmp.lt.s32.totalorder %s18, 1
      %s192 = scalar_select %p191, %s18, 1
      %p193 = scmp.lt.s32.totalorder %s190, 1
      %s194 = scalar_select %p193, %s190, 1
      %s195 = smul.addr %s192, 10
      %s196 = sadd.s32 %s194, %s195
      %s197 = smul.addr %s196, 8
      %s198 = scalar_lea.vmem %s2, %s197
      %s199 = smul.u32 2, %s19
      %s200 = smul.u32 2, %s19
      %p201 = scmp.lt.s32.totalorder %s18, 1
      %s202 = scalar_select %p201, %s18, 1
      %p203 = scmp.lt.s32.totalorder %s200, 1
      %s204 = scalar_select %p203, %s200, 1
      %s205 = smul.addr %s202, 2
      %s206 = sadd.s32 %s204, %s205
      %s207 = smul.addr %s206, 8
      %s208 = scalar_lea.vmem %s3, %s207
      %s209 = smul.u32 2, %s19
      %v210 = vld [vmem:[%s0] sm:$0xff]
      %v211 = vld [vmem:[%s198] sm:$0xff]
      %v212 = vld [vmem:[%s198 + $0x8] sm:$0xff]
      %v213 = vld [vmem:[%s198 + $0x10] sm:$0xff]
      %v214 = vld [vmem:[%s198 + $0x18] sm:$0xff]
      %v215 = vld [vmem:[%s198 + $0x20] sm:$0xff]
      %v216 = vld [vmem:[%s198 + $0x28] sm:$0xff]
      %v217 = vld [vmem:[%s198 + $0x30] sm:$0xff]
      %v218 = vld [vmem:[%s198 + $0x38] sm:$0xff]
      %v219 = vld [vmem:[%s198 + $0x40] sm:$0xf]
      %v220 = vld [vmem:[%s198 + $0x48] sm:$0xf]
      %v221 = vld [vmem:[%s1] sm:$0xff]
      %223 = vset.pattern.permute.xlu0 0
      %224 = vperm.xlu0 %223, %v221
      %v225 = vpop.permute.xlu0 %224
      %vm227 = vcmask 293888
      %v229 = vsel %vm227, %v210, 0
      %vm231 = vcmask 1043456
      %v233 = vsel %vm231, %v219, 0
      %v236 = vsel %vm231, %v220, 0
      %238 = vmatprep.subr.mxu0 %v212
      %239 = vmatpush1.msra.mxu0 %v211
      %240 = vmatprep.subr.mxu0 %v214
      %241 = vmatpush1.msra.mxu0 %v213
      %242 = vmatprep.subr.mxu0 %v216
      %243 = vmatpush1.msra.mxu0 %v215
      %244 = vmatprep.subr.mxu0 %v218
      %245 = vmatpush1.msra.mxu0 %v217
      %246 = vmatprep.subr.mxu0 %v236
      %247 = vmatpush1.msra.mxu0 %v233
      %248 = vmatprep.subr.mxu0 0.0
      %249 = vmatpush1.msra.mxu0 0.0
      %250 = vmatprep.subr.mxu0 0.0
      %251 = vmatpush1.msra.mxu0 0.0
      %252 = vmatprep.subr.mxu0 0.0
      %253 = vmatpush1.msra.mxu0 0.0
      %254 = vmatprep.subr.mxu0 0.0
      %255 = vmatpush1.msra.mxu0 0.0
      %256 = vmatprep.subr.mxu0 0.0
      %257 = vmatpush1.msra.mxu0 0.0
      %258 = vmatprep.subr.mxu0 0.0
      %259 = vmatpush1.msra.mxu0 0.0
      %260 = vmatprep.subr.mxu0 0.0
      %261 = vmatpush1.msra.mxu0 0.0
      %262 = vmatprep.subr.mxu0 0.0
      %263 = vmatpush1.msra.mxu0 0.0
      %264 = vmatprep.subr.mxu0 0.0
      %265 = vmatpush1.msra.mxu0 0.0
      %266 = vmatprep.subr.mxu0 0.0
      %267 = vmatpush1.msra.mxu0 0.0
      %268 = vmatprep.subr.mxu0 0.0
      %269 = vmatpush1.msra.mxu0 0.0
      %270 = vmatprep.subr.mxu0 0.0
      %271 = vmatpush1.msra.mxu0 0.0
      %272 = vmatprep.subr.mxu0 0.0
      %273 = vmatpush1.msra.mxu0 0.0
      %274 = vmatprep.subr.mxu0 0.0
      %275 = vmatpush1.msra.mxu0 0.0
      %276 = vmatprep.subr.mxu0 0.0
      %277 = vmatpush1.msra.mxu0 0.0
      %278 = vmatprep.subr.mxu0 0.0
      %279 = vmatpush1.msra.mxu0 0.0
      %280 = vmatprep.subr.mxu0 0.0
      %281 = vmatpush1.msra.mxu0 0.0
      %282 = vmatprep.subr.mxu0 0.0
      %283 = vmatpush1.msra.mxu0 0.0
      %284 = vmatprep.subr.mxu0 0.0
      %285 = vmatpush1.msra.mxu0 0.0
      %286 = vmatprep.subr.mxu0 0.0
      %287 = vmatpush1.msra.mxu0 0.0
      %288 = vmatprep.subr.mxu0 0.0
      %289 = vmatpush1.msra.mxu0 0.0
      %290 = vmatprep.subr.mxu0 0.0
      %291 = vmatpush1.msra.mxu0 0.0
      %292 = vmatprep.subr.mxu0 0.0
      %293 = vmatpush1.msra.mxu0 0.0
      %294 = vmatprep.subr.mxu0 0.0
      %295 = vmatpush1.msra.mxu0 0.0
      %296 = vmatprep.subr.mxu0 0.0
      %297 = vmatpush1.msra.mxu0 0.0
      %298 = vmatprep.subr.mxu0 0.0
      %299 = vmatpush1.msra.mxu0 0.0
      %300 = vmatprep.subr.mxu0 0.0
      %301 = vmatpush1.msra.mxu0 0.0
      %302 = vmatprep.mubr.f32.mxu0 0.0
      %303 = vmatmul.mubr.f32.gmra.mrb[0].mxu0 %v229
      %v304 = vpop.f32.mrb[0].mxu0
      %v305 = vadd.f32 %v225, %v304
      %v306 = vpop.f32.mrb[0].mxu0
      %v307 = vadd.f32 %v225, %v306
      %308 = vdwg.mxu0
      %v309 = vmax.f32 %v305, 0.0
      %v310 = vmax.f32 %v307, 0.0
      %311 = vst [vmem:[%s208] sm:$0xff] %v309
      %312 = vst [vmem:[%s208 + $0x8] sm:$0xff] %v310
      %s313 = smul.u32 2, %s19
      %p314 = scmp.lt.s32.totalorder %s18, 1
      %s315 = scalar_select %p314, %s18, 1
      %p316 = scmp.lt.s32.totalorder %s313, 1
      %s317 = scalar_select %p316, %s313, 1
      %s318 = smul.addr %s315, 2
      %s319 = sadd.s32 %s317, %s318
      %s320 = smul.addr %s319, 8
      %s321 = scalar_lea.vmem %s3, %s320
      // Predicated region
      $region33: #{de_conv_forward.1} parent=31 // pred_check
        %p322 = pneg %p116
      $region34: #{de_conv_forward.1} parent=31 // pred_check_branch
        %324 = sbr.rel (%p322) target = $region36
      $region35: #{de_conv_forward.1} parent=31 // pred_region
        %s325 = smul.u32 2, %s19
      $region36: #{de_conv_forward.1} parent=31 // pred_fallthru
        _
    $region32: #{de_conv_forward.1} parent=5 // pred_fallthru
      _
    %p326 = scmp.le.s32.totalorder 2, %s9
    // Predicated region
    $region37: #{de_conv_forward.1} parent=5 // pred_check
      %p327 = pneg %p326
    $region38: #{de_conv_forward.1} parent=5 // pred_check_branch
      %329 = sbr.rel (%p327) target = $region40
    $region39: #{de_conv_forward.1} parent=5 // pred_region
      %s330 = ssub.s32 %s9, 2
      // Predicated region
      $region41: #{de_conv_forward.1} parent=39 // pred_check
        %p331 = pneg %p122
      $region42: #{de_conv_forward.1} parent=39 // pred_check_branch
        %333 = sbr.rel (%p331) target = $region44
      $region43: #{de_conv_forward.1} parent=39 // pred_region
        %s334 = smul.u32 2, %s21
        %p335 = scmp.lt.s32.totalorder %s20, 1
        %s336 = scalar_select %p335, %s20, 1
        %p337 = scmp.lt.s32.totalorder %s334, 1
        %s338 = scalar_select %p337, %s334, 1
        %s339 = smul.addr %s336, 2
        %s340 = sadd.s32 %s338, %s339
        %s341 = smul.addr %s340, 8
        %s342 = scalar_lea.vmem %s3, %s341
      $region44: #{de_conv_forward.1} parent=39 // pred_fallthru
        _
    $region40: #{de_conv_forward.1} parent=5 // pred_fallthru
      _
  $region6: #{de_conv_forward.1} parent=0 // loop_footer
    %s13 = sadd.s32 1, %s9
  $region7: #{de_conv_forward.1} parent=0 // loop_footer_branch
    %8 = sbr.rel target = $region3
  $region8: #{de_conv_forward.1} parent=0 // loop_exit
    _

</llo_original>
